<compile_context>
chip_gen: v7x
topology: tpu7x:2x2x1
jax: 0.10.0
libtpu: 0.0.40
codegen_flags: <defaults>
</compile_context>

<pallas_src>
import functools

import jax
import jax.numpy as jnp
from jax.experimental import pallas as pl
from jax.experimental.pallas import tpu as pltpu

MARGIN = 2.0

# VMEM budget (bytes) for the four double-buffered input blocks; small enough
# that blocks + f32 temporaries fit the 16 MiB v5e scoped default with room.
_INPUT_BLOCK_VMEM_BUDGET = 8 * 1024 * 1024
_MAX_BLOCK_ROWS = 1024  # diminishing returns past ~512-1024 rows


def _triplet_loss_kernel(ai_ref, at_ref, ni_ref, nt_ref, out_ref, acc_ref, *,
                         block_rows, batch, scale, mask_rows):
    i = pl.program_id(0)

    @pl.when(i == 0)
    def _init():
        acc_ref[0] = jnp.float32(0.0)

    def _normalize(ref):
        # Compute in f32 regardless of wire dtype.
        x = ref[...].astype(jnp.float32)
        inv_norm = jax.lax.rsqrt(jnp.sum(x * x, axis=-1, keepdims=True))
        return x * inv_norm

    # Only two (block_rows, D) f32 temporaries live at the reduction.
    p = _normalize(ai_ref) + _normalize(at_ref)   # ai_n + at_n
    q = _normalize(ni_ref) + _normalize(nt_ref)   # ni_n + nt_n
    contrib = jnp.sum(p * q, axis=-1, keepdims=True)          # (block_rows, 1)

    if mask_rows:  # trace-time flag: only emitted when B % tb != 0
        rows = i * block_rows + jax.lax.broadcasted_iota(
            jnp.int32, (block_rows, 1), 0)
        contrib = jnp.where(rows < batch, contrib, 0.0)

    acc_ref[0] += jnp.sum(contrib)

    @pl.when(i == pl.num_programs(0) - 1)
    def _finalize():
        out_ref[0] = (MARGIN - 2.0) + acc_ref[0] * scale


def _pick_block_rows(batch, dim, itemsize):
    # 4 inputs x 2 pipeline buffers per input block.
    per_row_bytes = 4 * 2 * dim * itemsize
    tb = _INPUT_BLOCK_VMEM_BUDGET // per_row_bytes
    tb = min(tb, _MAX_BLOCK_ROWS)
    tb = (tb // 16) * 16  # multiple of 16 rows: legal sublane tiling, f32 & bf16
    if tb == 0 or tb >= batch:
        return batch      # single block == full array dim: always a legal shape
    return tb


def triplet_loss(triplet_samples, *, block_rows=None):
    """JAX wrapper mirroring Triplet_loss.forward. Returns a scalar f32 loss."""
    ai = triplet_samples['anchor_image']
    at = triplet_samples['anchor_text']
    ni = triplet_samples['negative_image']
    nt = triplet_samples['negative_text']
    # positive_image / positive_text are normalized in the original forward but
    # never contribute to the returned loss (dead code) -> intentionally unused.

    b, d = ai.shape
    itemsize = jnp.dtype(ai.dtype).itemsize
    tb = block_rows if block_rows is not None else _pick_block_rows(b, d, itemsize)
    tb = min(tb, b)
    nblocks = -(-b // tb)

    kernel = functools.partial(
        _triplet_loss_kernel,
        block_rows=tb,
        batch=b,
        scale=0.5 / float(b),
        mask_rows=(b % tb != 0),
    )

    in_specs = [pl.BlockSpec((tb, d), lambda i: (i, 0)) for _ in range(4)]

    out = pl.pallas_call(
        kernel,
        out_shape=jax.ShapeDtypeStruct((1,), jnp.float32),
        grid_spec=pltpu.PrefetchScalarGridSpec(
            num_scalar_prefetch=0,
            grid=(nblocks,),
            in_specs=in_specs,
            out_specs=pl.BlockSpec(memory_space=pltpu.SMEM),
            scratch_shapes=[pltpu.SMEM((1,), jnp.float32)],
        ),
        compiler_params=pltpu.CompilerParams(
            dimension_semantics=("arbitrary",)),
        cost_estimate=pl.CostEstimate(
            flops=16 * b * d,
            transcendentals=4 * b,
            bytes_accessed=4 * b * d * itemsize + 4),
    )(ai, at, ni, nt)
    return out[0]


# ----------------------------- self-test ------------------------------------
def _reference_loss(samples):
    def _norm(x):
        return x / jnp.linalg.norm(x, axis=-1, keepdims=True)

    ai = _norm(samples['anchor_image'])
    at = _norm(samples['anchor_text'])
    ni = _norm(samples['negative_image'])
    nt = _norm(samples['negative_text'])

    def _align(x, y):
        return MARGIN - jnp.mean(jnp.sum((x - y) ** 2, axis=1))

    return (_align(ai, ni) + _align(at, ni) + _align(at, nt) + _align(ai, nt)) / 4.0


def _make_samples(key, b, d, dtype=jnp.float32):
    names = ['anchor_image', 'anchor_text', 'positive_image',
             'positive_text', 'negative_image', 'negative_text']
    keys = jax.random.split(key, len(names))
    return {name: jax.random.normal(k, (b, d), dtype=dtype)
            for name, k in zip(names, keys)}


if __name__ == "__main__":
    key = jax.random.PRNGKey(0)

    # Small shape consistent with the module: single-block path (grid = 1).
    samples = _make_samples(key, 8, 32)
    loss = jax.block_until_ready(triplet_loss(samples))
    ref = _reference_loss(samples)
    assert jnp.allclose(loss, ref, atol=1e-5, rtol=1e-5), (loss, ref)

    # Exercise the gridded + masked-last-block path (B=40 not a multiple of 16).
    samples2 = _make_samples(jax.random.PRNGKey(1), 40, 32)
    loss2 = jax.block_until_ready(triplet_loss(samples2, block_rows=16))
    ref2 = _reference_loss(samples2)
    assert jnp.allclose(loss2, ref2, atol=1e-5, rtol=1e-5), (loss2, ref2)

    print("KERNEL_OK")
</pallas_src>

<mosaic_0001>
module attributes {stable_mosaic.version = 11 : i64} {
  func.func @_triplet_loss_kernel(%arg0: i32, %arg1: memref<8x32xf32, #tpu.memory_space<vmem>>, %arg2: memref<8x32xf32, #tpu.memory_space<vmem>>, %arg3: memref<8x32xf32, #tpu.memory_space<vmem>>, %arg4: memref<8x32xf32, #tpu.memory_space<vmem>>, %arg5: memref<1xf32, #tpu.memory_space<smem>>, %arg6: memref<1xf32, #tpu.memory_space<smem>>) attributes {dimension_semantics = [#tpu.dimension_semantics<arbitrary>], iteration_bounds = array<i64: 1>, scalar_prefetch = 0 : i64, scratch_operands = 1 : i64, tpu.core_type = #tpu.core_type<tc>, window_params = [{transform_indices = @transform_0, window_bounds = array<i64: 8, 32>}, {transform_indices = @transform_1, window_bounds = array<i64: 8, 32>}, {transform_indices = @transform_2, window_bounds = array<i64: 8, 32>}, {transform_indices = @transform_3, window_bounds = array<i64: 8, 32>}, {transform_indices = @transform_4, window_bounds = array<i64: 1>}]} {
    %c0_i32 = arith.constant 0 : i32
    %0 = arith.cmpi eq, %arg0, %c0_i32 : i32
    %1 = arith.extui %0 : i1 to i32
    %c0_i32_0 = arith.constant 0 : i32
    %2 = arith.cmpi ne, %1, %c0_i32_0 : i32
    scf.if %2 {
      %cst_17 = arith.constant 0.000000e+00 : f32
      %c0_18 = arith.constant 0 : index
      %46 = memref.load %arg6[%c0_18] : memref<1xf32, #tpu.memory_space<smem>>
      memref.store %cst_17, %arg6[%c0_18] : memref<1xf32, #tpu.memory_space<smem>>
    } else {
    }
    %c0 = arith.constant 0 : index
    %c0_1 = arith.constant 0 : index
    %3 = vector.load %arg1[%c0, %c0_1] : memref<8x32xf32, #tpu.memory_space<vmem>>, vector<8x32xf32>
    %4 = arith.mulf %3, %3 : vector<8x32xf32>
    %cst = arith.constant dense<0.000000e+00> : vector<8xf32>
    %5 = vector.multi_reduction <add>, %4, %cst [1] : vector<8x32xf32> to vector<8xf32>
    %6 = vector.shape_cast %5 : vector<8xf32> to vector<8x1xf32>
    %7 = math.rsqrt %6 : vector<8x1xf32>
    %8 = vector.broadcast %7 : vector<8x1xf32> to vector<8x32xf32>
    %9 = arith.mulf %3, %8 : vector<8x32xf32>
    %c0_2 = arith.constant 0 : index
    %c0_3 = arith.constant 0 : index
    %10 = vector.load %arg2[%c0_2, %c0_3] : memref<8x32xf32, #tpu.memory_space<vmem>>, vector<8x32xf32>
    %11 = arith.mulf %10, %10 : vector<8x32xf32>
    %cst_4 = arith.constant dense<0.000000e+00> : vector<8xf32>
    %12 = vector.multi_reduction <add>, %11, %cst_4 [1] : vector<8x32xf32> to vector<8xf32>
    %13 = vector.shape_cast %12 : vector<8xf32> to vector<8x1xf32>
    %14 = math.rsqrt %13 : vector<8x1xf32>
    %15 = vector.broadcast %14 : vector<8x1xf32> to vector<8x32xf32>
    %16 = arith.mulf %10, %15 : vector<8x32xf32>
    %17 = arith.addf %9, %16 : vector<8x32xf32>
    %c0_5 = arith.constant 0 : index
    %c0_6 = arith.constant 0 : index
    %18 = vector.load %arg3[%c0_5, %c0_6] : memref<8x32xf32, #tpu.memory_space<vmem>>, vector<8x32xf32>
    %19 = arith.mulf %18, %18 : vector<8x32xf32>
    %cst_7 = arith.constant dense<0.000000e+00> : vector<8xf32>
    %20 = vector.multi_reduction <add>, %19, %cst_7 [1] : vector<8x32xf32> to vector<8xf32>
    %21 = vector.shape_cast %20 : vector<8xf32> to vector<8x1xf32>
    %22 = math.rsqrt %21 : vector<8x1xf32>
    %23 = vector.broadcast %22 : vector<8x1xf32> to vector<8x32xf32>
    %24 = arith.mulf %18, %23 : vector<8x32xf32>
    %c0_8 = arith.constant 0 : index
    %c0_9 = arith.constant 0 : index
    %25 = vector.load %arg4[%c0_8, %c0_9] : memref<8x32xf32, #tpu.memory_space<vmem>>, vector<8x32xf32>
    %26 = arith.mulf %25, %25 : vector<8x32xf32>
    %cst_10 = arith.constant dense<0.000000e+00> : vector<8xf32>
    %27 = vector.multi_reduction <add>, %26, %cst_10 [1] : vector<8x32xf32> to vector<8xf32>
    %28 = vector.shape_cast %27 : vector<8xf32> to vector<8x1xf32>
    %29 = math.rsqrt %28 : vector<8x1xf32>
    %30 = vector.broadcast %29 : vector<8x1xf32> to vector<8x32xf32>
    %31 = arith.mulf %25, %30 : vector<8x32xf32>
    %32 = arith.addf %24, %31 : vector<8x32xf32>
    %33 = arith.mulf %17, %32 : vector<8x32xf32>
    %cst_11 = arith.constant dense<0.000000e+00> : vector<8xf32>
    %34 = vector.multi_reduction <add>, %33, %cst_11 [1] : vector<8x32xf32> to vector<8xf32>
    %35 = vector.shape_cast %34 : vector<8xf32> to vector<8x1xf32>
    %c0_12 = arith.constant 0 : index
    %36 = memref.load %arg6[%c0_12] : memref<1xf32, #tpu.memory_space<smem>>
    %37 = vector.shape_cast %35 : vector<8x1xf32> to vector<1x8x1xf32>
    %cst_13 = arith.constant dense<0.000000e+00> : vector<1xf32>
    %38 = vector.multi_reduction <add>, %37, %cst_13 [1, 2] : vector<1x8x1xf32> to vector<1xf32>
    %39 = vector.shape_cast %38 : vector<1xf32> to vector<1x1x1xf32>
    %40 = vector.extract %39[0, 0, 0] : f32 from vector<1x1x1xf32>
    %41 = arith.addf %36, %40 : f32
    %c0_14 = arith.constant 0 : index
    %42 = memref.load %arg6[%c0_14] : memref<1xf32, #tpu.memory_space<smem>>
    memref.store %41, %arg6[%c0_14] : memref<1xf32, #tpu.memory_space<smem>>
    %c0_i32_15 = arith.constant 0 : i32
    %43 = arith.cmpi eq, %arg0, %c0_i32_15 : i32
    %44 = arith.extui %43 : i1 to i32
    %c0_i32_16 = arith.constant 0 : i32
    %45 = arith.cmpi ne, %44, %c0_i32_16 : i32
    scf.if %45 {
      %c0_17 = arith.constant 0 : index
      %46 = memref.load %arg6[%c0_17] : memref<1xf32, #tpu.memory_space<smem>>
      %cst_18 = arith.constant 6.250000e-02 : f32
      %47 = arith.mulf %46, %cst_18 : f32
      %cst_19 = arith.constant 0.000000e+00 : f32
      %48 = arith.addf %cst_19, %47 : f32
      %c0_20 = arith.constant 0 : index
      %49 = memref.load %arg5[%c0_20] : memref<1xf32, #tpu.memory_space<smem>>
      memref.store %48, %arg5[%c0_20] : memref<1xf32, #tpu.memory_space<smem>>
    } else {
    }
    return
  }
  func.func @transform_0(%arg0: i32) -> (i32, i32) {
    %c0_i32 = arith.constant 0 : i32
    %c0_i32_0 = arith.constant 0 : i32
    return %arg0, %c0_i32 : i32, i32
  }
  func.func @transform_1(%arg0: i32) -> (i32, i32) {
    %c0_i32 = arith.constant 0 : i32
    %c0_i32_0 = arith.constant 0 : i32
    return %arg0, %c0_i32 : i32, i32
  }
  func.func @transform_2(%arg0: i32) -> (i32, i32) {
    %c0_i32 = arith.constant 0 : i32
    %c0_i32_0 = arith.constant 0 : i32
    return %arg0, %c0_i32 : i32, i32
  }
  func.func @transform_3(%arg0: i32) -> (i32, i32) {
    %c0_i32 = arith.constant 0 : i32
    %c0_i32_0 = arith.constant 0 : i32
    return %arg0, %c0_i32 : i32, i32
  }
  func.func @transform_4(%arg0: i32) -> i32 {
    %c0_i32 = arith.constant 0 : i32
    %c0_i32_0 = arith.constant 0 : i32
    return %c0_i32 : i32
  }
}

</mosaic_0001>

<llo_original>
// kernel: tpu_custom_call.1
$region0: #{tpu_custom_call.1}
  #allocation0 [shape = 'u32[]', space=smem, size = 0x4, offset = 0x4, fixed_abs, tag = 'smem constant byte address 0x4 - core index']
  #allocation1 [shape = 'u32[144,128]{1,0:T(1,128)}', space=vmem, size = 0x12000, scoped, tag = 'internal scratch']
  #allocation2 [shape = 'f32[1]{0:T(128)}', space=smem, size = 0x200, scoped, tag = 'scratch operand']
  %s0 = inlined_call_operand.hbm [shape: f32[8,32], index: 0, kind: input, shape index: {}]
  %s1 = inlined_call_operand.hbm [shape: f32[8,32], index: 1, kind: input, shape index: {}]
  %s2 = inlined_call_operand.hbm [shape: f32[8,32], index: 2, kind: input, shape index: {}]
  %s3 = inlined_call_operand.vmem [shape: f32[8,32], index: 3, kind: input, shape index: {}]
  %s4 = inlined_call_operand.hbm [shape: f32[1], index: 4, kind: output, shape index: {}]
  %s5 = sld [smem:[#allocation0]]
  $region46: #{tpu_custom_call.1} parent=0
    _
  %s7 = ssub.s32 1, %s5
  %s8 = scalar_select 0, %s7, %s5
  $region1: #{tpu_custom_call.1} parent=0
    #allocation3 [shape = 'u8[4096]{0}', space=vmem, size = 0x1000, scoped, tag = 'input window, operand 0, single buffered']
    #allocation4 [shape = 's32[1]{0}', space=sflag, size = 0x4, scoped, tag = 'scoped memory for tpu_custom_call.1']
    #allocation5 [shape = 's32[1]{0}', space=sflag, size = 0x4, scoped, tag = 'scoped memory for tpu_custom_call.1']
    #allocation6 [shape = 'u8[4096]{0}', space=vmem, size = 0x1000, scoped, tag = 'input window, operand 1, single buffered']
    #allocation7 [shape = 's32[1]{0}', space=sflag, size = 0x4, scoped, tag = 'scoped memory for tpu_custom_call.1']
    #allocation8 [shape = 'u8[4096]{0}', space=vmem, size = 0x1000, scoped, tag = 'input window, operand 2, single buffered']
    #allocation9 [shape = 'u8[512]{0}', space=smem, size = 0x200, scoped, tag = 'output window, operand 0, single buffered']
    %9 = vsyncpa [#allocation4], 0
    %10 = vsyncpa [#allocation7], 0
    %11 = vsyncpa [#allocation5], 0
    // Predicated region
    $region2: #{tpu_custom_call.1} parent=1 // pred_check
      _
    $region3: #{tpu_custom_call.1} parent=1 // pred_check_branch
      %13 = sbr.rel (0) target = $region5
    $region4: #{tpu_custom_call.1} parent=1 // pred_region
      %s15 = ssub.s32 128, 128
      %16 = vsyncadd [#allocation4], %s15
      %s18 = sshll.u32 [#allocation3], 4
      %s19 = int_to_ptr.vmem [resolvable:$true] %s18
      %21 = dma.hbm_to_vmem [thread:$0]  %s0, 128, %s19, [#allocation4]
    $region5: #{tpu_custom_call.1} parent=1 // pred_fallthru
      _
    // Predicated region
    $region6: #{tpu_custom_call.1} parent=1 // pred_check
      _
    $region7: #{tpu_custom_call.1} parent=1 // pred_check_branch
      %23 = sbr.rel (0) target = $region9
    $region8: #{tpu_custom_call.1} parent=1 // pred_region
      %s25 = ssub.s32 128, 128
      %26 = vsyncadd [#allocation7], %s25
      %s28 = sshll.u32 [#allocation6], 4
      %s29 = int_to_ptr.vmem [resolvable:$true] %s28
      %31 = dma.hbm_to_vmem [thread:$0]  %s1, 128, %s29, [#allocation7]
    $region9: #{tpu_custom_call.1} parent=1 // pred_fallthru
      _
    // Predicated region
    $region10: #{tpu_custom_call.1} parent=1 // pred_check
      _
    $region11: #{tpu_custom_call.1} parent=1 // pred_check_branch
      %33 = sbr.rel (0) target = $region13
    $region12: #{tpu_custom_call.1} parent=1 // pred_region
      %s35 = ssub.s32 128, 128
      %36 = vsyncadd [#allocation7], %s35
      %s38 = sshll.u32 [#allocation8], 4
      %s39 = int_to_ptr.vmem [resolvable:$true] %s38
      %41 = dma.hbm_to_vmem [thread:$0]  %s2, 128, %s39, [#allocation7]
    $region13: #{tpu_custom_call.1} parent=1 // pred_fallthru
      _
    // Predicated region
    $region14: #{tpu_custom_call.1} parent=1 // pred_check
      _
    $region15: #{tpu_custom_call.1} parent=1 // pred_check_branch
      %43 = sbr.rel (0) target = $region17
    $region16: #{tpu_custom_call.1} parent=1 // pred_region
      _
    $region17: #{tpu_custom_call.1} parent=1 // pred_fallthru
      _
    // Predicated region
    $region18: #{tpu_custom_call.1} parent=1 // pred_check
      _
    $region19: #{tpu_custom_call.1} parent=1 // pred_check_branch
      %45 = sbr.rel (0) target = $region21
    $region20: #{tpu_custom_call.1} parent=1 // pred_region
      %46 = dma.done [#allocation4], 128
    $region21: #{tpu_custom_call.1} parent=1 // pred_fallthru
      _
    // Predicated region
    $region22: #{tpu_custom_call.1} parent=1 // pred_check
      _
    $region23: #{tpu_custom_call.1} parent=1 // pred_check_branch
      %48 = sbr.rel (0) target = $region25
    $region24: #{tpu_custom_call.1} parent=1 // pred_region
      %49 = dma.done [#allocation7], 128
    $region25: #{tpu_custom_call.1} parent=1 // pred_fallthru
      _
    // Predicated region
    $region26: #{tpu_custom_call.1} parent=1 // pred_check
      _
    $region27: #{tpu_custom_call.1} parent=1 // pred_check_branch
      %51 = sbr.rel (0) target = $region29
    $region28: #{tpu_custom_call.1} parent=1 // pred_region
      %52 = dma.done [#allocation7], 128
    $region29: #{tpu_custom_call.1} parent=1 // pred_fallthru
      _
    %p53 = scmp.eq.s32.totalorder 0, 0
    // Predicated region
    $region30: #{tpu_custom_call.1} parent=1 // pred_check
      %p54 = pneg %p53
    $region31: #{tpu_custom_call.1} parent=1 // pred_check_branch
      %56 = sbr.rel (%p54) target = $region33
    $region32: #{tpu_custom_call.1} parent=1 // pred_region
      %s57 = scalar_lea.smem [#allocation2], 0
      %58 = sst [smem:[%s57]] 0.0
    $region33: #{tpu_custom_call.1} parent=1 // pred_fallthru
      _
    %v59 = vld [vmem:[#allocation3] sm:$0xff]
    %v60 = vmul.f32 %v59, %v59
    %vm61 = vcmask 261120
    %v62 = vsel %vm61, %v60, 0.0
    %63 = vadd.xlane.f32.xlu0 %v62
    %v64 = vpop.xlane.xlu0 %63
    %v65 = vrsqrt.pop %v64
    %v66 = vmul.f32 %v59, %v65
    %v67 = vld [vmem:[#allocation6] sm:$0xff]
    %v68 = vmul.f32 %v67, %v67
    %v69 = vsel %vm61, %v68, 0.0
    %70 = vadd.xlane.f32.xlu0 %v69
    %v71 = vpop.xlane.xlu0 %70
    %v72 = vrsqrt.pop %v71
    %v73 = vmul.f32 %v67, %v72
    %v74 = vadd.f32 %v66, %v73
    %v75 = vld [vmem:[#allocation8] sm:$0xff]
    %v76 = vmul.f32 %v75, %v75
    %v77 = vsel %vm61, %v76, 0.0
    %78 = vadd.xlane.f32.xlu0 %v77
    %v79 = vpop.xlane.xlu0 %78
    %v80 = vrsqrt.pop %v79
    %v81 = vmul.f32 %v75, %v80
    %v82 = vld [vmem:[%s3] sm:$0xff]
    %v83 = vmul.f32 %v82, %v82
    %v84 = vsel %vm61, %v83, 0.0
    %85 = vadd.xlane.f32.xlu0 %v84
    %v86 = vpop.xlane.xlu0 %85
    %v87 = vrsqrt.pop %v86
    %v88 = vmul.f32 %v82, %v87
    %v89 = vadd.f32 %v81, %v88
    %v90 = vmul.f32 %v74, %v89
    %v91 = vsel %vm61, %v90, 0.0
    %92 = vadd.xlane.f32.xlu0 %v91
    %v93 = vpop.xlane.xlu0 %92
    %s94 = sld [smem:[#allocation2]]
    %vm95 = vcmask 7168
    %v96 = vsel %vm95, %v93, 0.0
    %97 = vadd.xlane.f32.xlu0 %v96
    %v98 = vpop.xlane.xlu0 %97
    %v99 = vrot.slane %v98, 4
    %v100 = vadd.f32 %v98, %v99
    %v101 = vrot.slane %v100, 2
    %v102 = vadd.f32 %v100, %v101
    %v103 = vrot.slane %v102, 1
    %v104 = vadd.f32 %v102, %v103
    %s105 = vtos %v104
    %s106 = sadd.f32 %s94, %s105
    %s107 = scalar_lea.smem [#allocation2], 0
    %108 = sst [smem:[%s107]] %s106
    // Predicated region
    $region34: #{tpu_custom_call.1} parent=1 // pred_check
      %p109 = pneg %p53
    $region35: #{tpu_custom_call.1} parent=1 // pred_check_branch
      %111 = sbr.rel (%p109) target = $region37
    $region36: #{tpu_custom_call.1} parent=1 // pred_region
      %s112 = sld [smem:[#allocation2]]
      %s113 = smul.f32 %s112, 0.0625
      %s114 = sadd.f32 %s113, 0.0
      %s115 = scalar_lea.smem [#allocation9], 0
      %116 = sst [smem:[%s115]] %s114
    $region37: #{tpu_custom_call.1} parent=1 // pred_fallthru
      _
    // Predicated region
    $region38: #{tpu_custom_call.1} parent=1 // pred_check
      _
    $region39: #{tpu_custom_call.1} parent=1 // pred_check_branch
      %118 = sbr.rel (0) target = $region41
    $region40: #{tpu_custom_call.1} parent=1 // pred_region
      %s120 = ssub.s32 16, 16
      %121 = vsyncadd [#allocation5], %s120
      %124 = dma.smem_to_hbm [#allocation9], 16, %s4, [#allocation5]
    $region41: #{tpu_custom_call.1} parent=1 // pred_fallthru
      _
    // Predicated region
    $region42: #{tpu_custom_call.1} parent=1 // pred_check
      _
    $region43: #{tpu_custom_call.1} parent=1 // pred_check_branch
      %126 = sbr.rel (0) target = $region45
    $region44: #{tpu_custom_call.1} parent=1 // pred_region
      %127 = dma.done [#allocation5], 16
    $region45: #{tpu_custom_call.1} parent=1 // pred_fallthru
      _
    %128 = sfence
    %129 = vsyncpa [#allocation4], 1
    %130 = vsyncpa [#allocation7], 1
    %131 = vsyncpa [#allocation5], 1

</llo_original>
